<compile_context>
chip_gen: v7x
topology: tpu7x:2x2x1
jax: 0.10.0
libtpu: 0.0.40
codegen_flags: <defaults>
</compile_context>

<pallas_src>
import functools
from typing import NamedTuple

import jax
import jax.numpy as jnp
from jax import lax
from jax.experimental import pallas as pl
from jax.experimental.pallas import tpu as pltpu


class FeatureMaps(NamedTuple):
    content: list
    style: list


def _round_up(x, m):
    return (x + m - 1) // m * m


# ----------------------------- Pallas kernels -----------------------------

def _normalize_kernel(x_ref, mean_ref, inv_std_ref, o_ref):
    # x: (C, TL); mean / inv_std: (C, 1) broadcast along lanes
    o_ref[...] = (x_ref[...] - mean_ref[...]) * inv_std_ref[...]


def _conv3x3_kernel(x_hbm, w_ref, b_ref, o_ref, xbuf, sems, *,
                    w_img, tm, apply_relu):
    """Fused 3x3 conv + bias (+ optional ReLU) over flattened padded rows.

    x_hbm : (Mx, Cin)       bf16 in HBM (memory_space=ANY), padded image rows
    w_ref : (9, Cin, Coutp) bf16, resident VMEM (one (Cin,Coutp) mat per tap)
    b_ref : (1, Coutp)      f32, resident VMEM
    o_ref : (TM, Coutp)     f32 output block
    xbuf  : (9, TM, Cin)    bf16 VMEM scratch, one tile per tap
    sems  : (9,)            DMA semaphores
    """
    i = pl.program_id(0)
    base = i * tm
    wp = w_img + 2  # padded image width

    # Kick off all 9 tap DMAs; they overlap each other and the matmuls below.
    copies = []
    for t in range(9):
        dy, dx = divmod(t, 3)
        cp = pltpu.make_async_copy(
            x_hbm.at[pl.ds(base + dy * wp + dx, tm)], xbuf.at[t], sems.at[t])
        cp.start()
        copies.append(cp)

    acc = jnp.zeros(o_ref.shape, jnp.float32)
    for t in range(9):
        copies[t].wait()
        acc = acc + jnp.dot(xbuf[t], w_ref[t],
                            preferred_element_type=jnp.float32)
    acc = acc + b_ref[...]
    if apply_relu:
        acc = jnp.maximum(acc, 0.0)
    o_ref[...] = acc


def _relu_kernel(x_ref, o_ref):
    o_ref[...] = jnp.maximum(x_ref[...], 0.0)


def _avgpool_kernel(x_ref, o_ref, *, cp):
    # x_ref: (TRo, 2, Wo, 2*cp)  ->  o_ref: (TRo, Wo, cp)
    # Row pairing: integer slice on a major dim of the loaded value.
    # Column pairing: lane-aligned channel split (cp is a multiple of 128).
    x = x_ref[...]
    s = x[:, 0] + x[:, 1]                       # (TRo, Wo, 2*cp)
    o_ref[...] = 0.25 * (s[:, :, :cp] + s[:, :, cp:])


# ----------------------------- op wrappers ---------------------------------

def normalize(x_chw, mean, std, tl=4096):
    """T.Normalize(mean, std) on a (C, H, W) image -> (H, W, C)."""
    C, H, W = x_chw.shape
    HW = H * W
    x2 = x_chw.reshape(C, HW).astype(jnp.float32)
    m2 = mean.reshape(C, 1).astype(jnp.float32)
    s2 = (1.0 / std).reshape(C, 1).astype(jnp.float32)
    TL = min(tl, _round_up(HW, 128))
    grid = (pl.cdiv(HW, TL),)
    out = pl.pallas_call(
        _normalize_kernel,
        out_shape=jax.ShapeDtypeStruct((C, HW), jnp.float32),
        grid=grid,
        in_specs=[pl.BlockSpec((C, TL), lambda i: (0, i)),
                  pl.BlockSpec((C, 1), lambda i: (0, 0)),
                  pl.BlockSpec((C, 1), lambda i: (0, 0))],
        out_specs=pl.BlockSpec((C, TL), lambda i: (0, i)),
        compiler_params=pltpu.CompilerParams(
            dimension_semantics=("parallel",)),
    )(x2, m2, s2)
    return jnp.transpose(out.reshape(C, H, W), (1, 2, 0))


def conv3x3_bias_act(x_hwc, c_in, w_oihw, bias, *, apply_relu, tm=256):
    """nn.Conv2d(Cin, Cout, 3, padding=1) [+ bias + optional ReLU fused].

    x_hwc: (H, W, Cp_in) activation (channels possibly zero-padded, only the
           first `c_in` are real).  Returns ((H, W, Coutp), Cout) with Coutp a
           multiple of 128 (lane-dense stores), extra channels zero.
    """
    H, W, _ = x_hwc.shape
    Cin = c_in
    Cout = w_oihw.shape[0]
    Coutp = _round_up(Cout, 128)
    Wp = W + 2

    # Output pixel (y, x) lives at flattened row m = y*(W+2) + x of the padded
    # image; tap (dy, dx) reads padded row m + dy*(W+2) + dx.  Columns
    # x in {W, W+1} are junk and cropped after the kernel.
    M_valid = H * Wp
    TM = min(tm, _round_up(M_valid, 8))
    num_tiles = pl.cdiv(M_valid, TM)
    M_pad = num_tiles * TM
    Mx = M_pad + 2 * Wp + 2  # rows the DMAs may touch

    xp = jnp.pad(x_hwc[:, :, :Cin], ((1, 1), (1, 1), (0, 0)))  # (H+2, Wp, Cin)
    Xp = xp.reshape((H + 2) * Wp, Cin)
    Xp = jnp.pad(Xp, ((0, Mx - (H + 2) * Wp), (0, 0))).astype(jnp.bfloat16)

    # (Cout, Cin, 3, 3) -> (dy, dx, Cin, Cout) -> (9, Cin, Coutp), bf16
    w2 = jnp.transpose(w_oihw, (2, 3, 1, 0)).reshape(9, Cin, Cout)
    w2 = jnp.pad(w2, ((0, 0), (0, 0), (0, Coutp - Cout))).astype(jnp.bfloat16)
    b2 = jnp.pad(bias, (0, Coutp - Cout)).reshape(1, Coutp).astype(jnp.float32)

    kernel = functools.partial(_conv3x3_kernel, w_img=W, tm=TM,
                               apply_relu=apply_relu)
    out = pl.pallas_call(
        kernel,
        out_shape=jax.ShapeDtypeStruct((M_pad, Coutp), jnp.float32),
        grid=(num_tiles,),
        in_specs=[
            pl.BlockSpec(memory_space=pl.ANY),                   # Xp in HBM
            pl.BlockSpec((9, Cin, Coutp), lambda i: (0, 0, 0)),  # resident W
            pl.BlockSpec((1, Coutp), lambda i: (0, 0)),          # resident b
        ],
        out_specs=pl.BlockSpec((TM, Coutp), lambda i: (i, 0)),
        scratch_shapes=[pltpu.VMEM((9, TM, Cin), jnp.bfloat16),
                        pltpu.SemaphoreType.DMA((9,))],
        compiler_params=pltpu.CompilerParams(
            dimension_semantics=("parallel",),      # no cross-step state
            vmem_limit_bytes=48 * 1024 * 1024),     # explicit, safe on v5e..v7x
    )(Xp, w2, b2)

    # crop the junk columns / tail rows -> (H, W, Coutp)
    out = out[:M_valid].reshape(H, Wp, Coutp)[:, :W, :]
    return out, Cout


def relu_act(x_hwc, tm=512):
    """nn.ReLU(inplace=False) (only used when the pre-ReLU conv output is
    collected; otherwise ReLU is fused into the conv kernel)."""
    H, W, Cp = x_hwc.shape
    M = H * W
    TM = min(tm, _round_up(M, 8))
    grid = (pl.cdiv(M, TM),)
    out = pl.pallas_call(
        _relu_kernel,
        out_shape=jax.ShapeDtypeStruct((M, Cp), jnp.float32),
        grid=grid,
        in_specs=[pl.BlockSpec((TM, Cp), lambda i: (i, 0))],
        out_specs=pl.BlockSpec((TM, Cp), lambda i: (i, 0)),
        compiler_params=pltpu.CompilerParams(
            dimension_semantics=("parallel",)),
    )(x_hwc.reshape(M, Cp))
    return out.reshape(H, W, Cp)


def avg_pool2x2(x_hwc, tro=8):
    """nn.AvgPool2d(kernel_size=2, stride=2).

    The 2x2 window is exposed by a free, row-major reshape outside the kernel:
    (H, W, Cp) -> (Ho, 2, Wo, 2*Cp), so the in-kernel reduction needs only a
    major-dim slice (row pair) and a lane-aligned channel split (column pair).
    """
    H, W, Cp = x_hwc.shape
    Ho, Wo = H // 2, W // 2
    x4 = x_hwc.reshape(Ho, 2, Wo, 2 * Cp)          # metadata-only reshape
    TRo = min(tro, Ho)
    grid = (pl.cdiv(Ho, TRo),)
    kernel = functools.partial(_avgpool_kernel, cp=Cp)
    out = pl.pallas_call(
        kernel,
        out_shape=jax.ShapeDtypeStruct((Ho, Wo, Cp), jnp.float32),
        grid=grid,
        in_specs=[pl.BlockSpec((TRo, 2, Wo, 2 * Cp), lambda i: (i, 0, 0, 0))],
        out_specs=pl.BlockSpec((TRo, Wo, Cp), lambda i: (i, 0, 0)),
        compiler_params=pltpu.CompilerParams(
            dimension_semantics=("parallel",)),
    )(x4)
    return out


# ------------------------- the extractor module ----------------------------

class BaseVGGFeatureMapExtractorPallas:
    """Pallas port of BaseVGGFeatureMapExtractor.

    `vgg_layers` describes self.vgg.children() after __init__'s surgery:
      ("conv", (w, b)) | ("relu", None) | ("pool", None)
    where "pool" is the AvgPool2d(2, 2) that replaced MaxPool2d.
    """

    IMAGENET_MEAN = jnp.array([0.485, 0.456, 0.406], dtype=jnp.float32)
    IMAGENET_STD = jnp.array([0.229, 0.224, 0.225], dtype=jnp.float32)

    def __init__(self, vgg_layers, content_layer_indices, style_layer_indices):
        self._layers = vgg_layers
        self._content_layer_indices = list(content_layer_indices)
        self._style_layer_indices = list(style_layer_indices)

    def __call__(self, x_chw):
        needed = set(self._content_layer_indices) | set(self._style_layer_indices)
        content, style = [], []

        def collect(idx, act, c):
            if idx in needed:
                feat = jnp.transpose(act[:, :, :c], (2, 0, 1))[None]  # (1,C,H,W)
                if idx in self._content_layer_indices:
                    content.append(feat)
                if idx in self._style_layer_indices:
                    style.append(feat)

        act = normalize(x_chw, self.IMAGENET_MEAN, self.IMAGENET_STD)  # (H,W,3)
        c = 3
        layers = self._layers
        n = len(layers)
        idx = 0
        while idx < n:
            kind, params = layers[idx]
            if kind == "conv":
                w, b = params
                fuse = (idx + 1 < n and layers[idx + 1][0] == "relu"
                        and idx not in needed)
                act, c = conv3x3_bias_act(act, c, w, b, apply_relu=fuse)
                if fuse:
                    collect(idx + 1, act, c)
                    idx += 2
                else:
                    collect(idx, act, c)
                    idx += 1
            elif kind == "relu":
                act = relu_act(act)
                collect(idx, act, c)
                idx += 1
            elif kind == "pool":
                act = avg_pool2x2(act)
                collect(idx, act, c)
                idx += 1
            else:
                raise ValueError(kind)
        return FeatureMaps(content=content, style=style)


# --------------------------- pure-JAX reference -----------------------------

def _ref_forward(x_chw, layers, mean, std, content_idx, style_idx):
    x = (x_chw - mean[:, None, None]) / std[:, None, None]
    x = x[None]  # (1, C, H, W)
    content, style = [], []
    for idx, (kind, params) in enumerate(layers):
        if kind == "conv":
            w, b = params
            x = lax.conv_general_dilated(
                x, w, window_strides=(1, 1), padding=((1, 1), (1, 1)),
                dimension_numbers=("NCHW", "OIHW", "NCHW"))
            x = x + b[None, :, None, None]
        elif kind == "relu":
            x = jnp.maximum(x, 0.0)
        else:  # pool
            N, C, H, W = x.shape
            x = x.reshape(N, C, H // 2, 2, W // 2, 2).mean(axis=(3, 5))
        if idx in content_idx:
            content.append(x)
        if idx in style_idx:
            style.append(x)
    return FeatureMaps(content=content, style=style)


# ---------------------------------- main ------------------------------------

if __name__ == "__main__":
    key = jax.random.PRNGKey(0)
    k_img, k0, k1, k2 = jax.random.split(key, 4)

    def make_conv(k, cin, cout):
        kw, kb = jax.random.split(k)
        w = 0.1 * jax.random.normal(kw, (cout, cin, 3, 3), jnp.float32)
        b = 0.1 * jax.random.normal(kb, (cout,), jnp.float32)
        return w, b

    # Small synthetic VGG prefix (deterministic weights, no checkpoint):
    #   0: Conv2d(3, 8, 3, pad=1)   1: ReLU
    #   2: Conv2d(8, 8, 3, pad=1)   3: ReLU
    #   4: AvgPool2d(2, 2)          (was MaxPool2d, replaced in __init__)
    #   5: Conv2d(8, 16, 3, pad=1)  6: ReLU
    vgg_layers = [
        ("conv", make_conv(k0, 3, 8)),
        ("relu", None),
        ("conv", make_conv(k1, 8, 8)),
        ("relu", None),
        ("pool", None),
        ("conv", make_conv(k2, 8, 16)),
        ("relu", None),
    ]
    content_layer_indices = [6]
    # index 5 (pre-ReLU conv) also requested -> exercises the un-fused
    # conv + standalone ReLU path in addition to the fused conv+ReLU path.
    style_layer_indices = [1, 3, 5, 6]

    extractor = BaseVGGFeatureMapExtractorPallas(
        vgg_layers, content_layer_indices, style_layer_indices)

    # Input image, like the PyTorch module: (3, H, W) in [0, 1]
    x = jax.random.uniform(k_img, (3, 16, 16), dtype=jnp.float32)

    feats = extractor(x)
    feats = jax.block_until_ready(feats)

    # correctness check against a plain-JAX reference (bf16 MXU inputs,
    # f32 accumulation -> loose-ish tolerance)
    ref = _ref_forward(x, vgg_layers,
                       extractor.IMAGENET_MEAN, extractor.IMAGENET_STD,
                       content_layer_indices, style_layer_indices)
    for got, want in list(zip(feats.content, ref.content)) + \
                     list(zip(feats.style, ref.style)):
        assert got.shape == want.shape and got.dtype == want.dtype
        assert jnp.allclose(got, want, atol=3e-2, rtol=3e-2), \
            float(jnp.max(jnp.abs(got - want)))

    print("KERNEL_OK")
</pallas_src>

<mosaic_0001>
module attributes {stable_mosaic.version = 11 : i64} {
  func.func @_normalize_kernel(%arg0: i32, %arg1: memref<3x256xf32, #tpu.memory_space<vmem>>, %arg2: memref<3x1xf32, #tpu.memory_space<vmem>>, %arg3: memref<3x1xf32, #tpu.memory_space<vmem>>, %arg4: memref<3x256xf32, #tpu.memory_space<vmem>>) attributes {dimension_semantics = [#tpu.dimension_semantics<parallel>], iteration_bounds = array<i64: 1>, scalar_prefetch = 0 : i64, scratch_operands = 0 : i64, tpu.core_type = #tpu.core_type<tc>, window_params = [{transform_indices = @transform_0, window_bounds = array<i64: 3, 256>}, {pipeline_mode = #tpu.pipeline_mode<synchronous>, transform_indices = @transform_1, window_bounds = array<i64: 3, 1>}, {pipeline_mode = #tpu.pipeline_mode<synchronous>, transform_indices = @transform_2, window_bounds = array<i64: 3, 1>}, {transform_indices = @transform_3, window_bounds = array<i64: 3, 256>}]} {
    %c0 = arith.constant 0 : index
    %c0_0 = arith.constant 0 : index
    %0 = vector.load %arg1[%c0, %c0_0] : memref<3x256xf32, #tpu.memory_space<vmem>>, vector<3x256xf32>
    %c0_1 = arith.constant 0 : index
    %c0_2 = arith.constant 0 : index
    %1 = vector.load %arg2[%c0_1, %c0_2] : memref<3x1xf32, #tpu.memory_space<vmem>>, vector<3x1xf32>
    %2 = vector.broadcast %1 : vector<3x1xf32> to vector<3x256xf32>
    %3 = arith.subf %0, %2 : vector<3x256xf32>
    %c0_3 = arith.constant 0 : index
    %c0_4 = arith.constant 0 : index
    %4 = vector.load %arg3[%c0_3, %c0_4] : memref<3x1xf32, #tpu.memory_space<vmem>>, vector<3x1xf32>
    %5 = vector.broadcast %4 : vector<3x1xf32> to vector<3x256xf32>
    %6 = arith.mulf %3, %5 : vector<3x256xf32>
    %c0_5 = arith.constant 0 : index
    %c0_6 = arith.constant 0 : index
    %7 = vector.load %arg4[%c0_5, %c0_6] : memref<3x256xf32, #tpu.memory_space<vmem>>, vector<3x256xf32>
    tpu.vector_store %arg4[%c0_5, %c0_6], %6 {strides = array<i32>} : memref<3x256xf32, #tpu.memory_space<vmem>>, vector<3x256xf32>,
    return
  }
  func.func @transform_0(%arg0: i32) -> (i32, i32) {
    %c0_i32 = arith.constant 0 : i32
    %c0_i32_0 = arith.constant 0 : i32
    return %c0_i32, %arg0 : i32, i32
  }
  func.func @transform_1(%arg0: i32) -> (i32, i32) {
    %c0_i32 = arith.constant 0 : i32
    %c0_i32_0 = arith.constant 0 : i32
    %c0_i32_1 = arith.constant 0 : i32
    return %c0_i32, %c0_i32_0 : i32, i32
  }
  func.func @transform_2(%arg0: i32) -> (i32, i32) {
    %c0_i32 = arith.constant 0 : i32
    %c0_i32_0 = arith.constant 0 : i32
    %c0_i32_1 = arith.constant 0 : i32
    return %c0_i32, %c0_i32_0 : i32, i32
  }
  func.func @transform_3(%arg0: i32) -> (i32, i32) {
    %c0_i32 = arith.constant 0 : i32
    %c0_i32_0 = arith.constant 0 : i32
    return %c0_i32, %arg0 : i32, i32
  }
}

</mosaic_0001>

<llo_original>
// kernel: tpu_custom_call.1
$region0: #{tpu_custom_call.1}
  #allocation0 [shape = 'u32[]', space=smem, size = 0x4, offset = 0x4, fixed_abs, tag = 'smem constant byte address 0x4 - core index']
  #allocation1 [shape = 'u32[144,128]{1,0:T(1,128)}', space=vmem, size = 0x12000, scoped, tag = 'internal scratch']
  %s0 = inlined_call_operand.vmem [shape: f32[3,256], index: 0, kind: input, shape index: {}]
  %s1 = inlined_call_operand.vmem [shape: f32[3,1], index: 1, kind: input, shape index: {}]
  %s2 = inlined_call_operand.vmem [shape: f32[3,1], index: 2, kind: input, shape index: {}]
  %s3 = inlined_call_operand.hbm [shape: f32[3,256], index: 3, kind: output, shape index: {}]
  %s4 = sld [smem:[#allocation0]]
  $region22: #{tpu_custom_call.1} parent=0
    _
  %s6 = ssub.s32 1, %s4
  %s7 = scalar_select 0, %s6, %s4
  $region1: #{tpu_custom_call.1} parent=0
    #allocation2 [shape = 'u8[4096]{0}', space=vmem, size = 0x1000, scoped, tag = 'output window, operand 0, single buffered']
    #allocation3 [shape = 's32[1]{0}', space=sflag, size = 0x4, scoped, tag = 'scoped memory for tpu_custom_call.1']
    %8 = vsyncpa [#allocation3], 0
    // Predicated region
    $region2: #{tpu_custom_call.1} parent=1 // pred_check
      _
    $region3: #{tpu_custom_call.1} parent=1 // pred_check_branch
      %10 = sbr.rel (0) target = $region5
    $region4: #{tpu_custom_call.1} parent=1 // pred_region
      _
    $region5: #{tpu_custom_call.1} parent=1 // pred_fallthru
      _
    // Predicated region
    $region6: #{tpu_custom_call.1} parent=1 // pred_check
      _
    $region7: #{tpu_custom_call.1} parent=1 // pred_check_branch
      %12 = sbr.rel (0) target = $region9
    $region8: #{tpu_custom_call.1} parent=1 // pred_region
      _
    $region9: #{tpu_custom_call.1} parent=1 // pred_fallthru
      _
    // Predicated region
    $region10: #{tpu_custom_call.1} parent=1 // pred_check
      _
    $region11: #{tpu_custom_call.1} parent=1 // pred_check_branch
      %14 = sbr.rel (0) target = $region13
    $region12: #{tpu_custom_call.1} parent=1 // pred_region
      _
    $region13: #{tpu_custom_call.1} parent=1 // pred_fallthru
      _
    %v15 = vld [vmem:[%s0] sm:$0x77]
    %v16 = vld [vmem:[%s1] sm:$0x7]
    %18 = vset.pattern.permute.xlu0 0
    %19 = vperm.xlu0 %18, %v16
    %v20 = vpop.permute.xlu0 %19
    %v22 = vunpack.c.l.s4 839922192
    %v23 = vunpack.c.0.s8 %v22
    %v24 = vlaneseq
    %v25 = vshrl.u32 %v24, 7
    %v26 = vsub.s32 %v23, %v25
    %v27 = vrot.slane %v20, %v26
    %v29 = vsub.f32 %v15, %v27
    %v30 = vld [vmem:[%s2] sm:$0x7]
    %32 = vset.pattern.permute.xlu0 0
    %33 = vperm.xlu0 %32, %v30
    %v34 = vpop.permute.xlu0 %33
    %v36 = vunpack.c.l.s4 839922192
    %v37 = vunpack.c.0.s8 %v36
    %v38 = vlaneseq
    %v39 = vshrl.u32 %v38, 7
    %v40 = vsub.s32 %v37, %v39
    %v41 = vrot.slane %v34, %v40
    %v43 = vmul.f32 %v29, %v41
    %44 = vst [vmem:[#allocation2] sm:$0x77] %v43
    // Predicated region
    $region14: #{tpu_custom_call.1} parent=1 // pred_check
      _
    $region15: #{tpu_custom_call.1} parent=1 // pred_check_branch
      %46 = sbr.rel (0) target = $region17
    $region16: #{tpu_custom_call.1} parent=1 // pred_region
      %s48 = ssub.s32 128, 128
      %49 = vsyncadd [#allocation3], %s48
      %s51 = sshll.u32 [#allocation2], 4
      %s52 = int_to_ptr.vmem [resolvable:$true] %s51
      %54 = dma.vmem_to_hbm [thread:$0]  %s52, 128, %s3, [#allocation3]
    $region17: #{tpu_custom_call.1} parent=1 // pred_fallthru
      _
    // Predicated region
    $region18: #{tpu_custom_call.1} parent=1 // pred_check
      _
    $region19: #{tpu_custom_call.1} parent=1 // pred_check_branch
      %56 = sbr.rel (0) target = $region21
    $region20: #{tpu_custom_call.1} parent=1 // pred_region
      %57 = dma.done [#allocation3], 128
    $region21: #{tpu_custom_call.1} parent=1 // pred_fallthru
      _
    %58 = vsyncpa [#allocation3], 1

</llo_original>
